<compile_context>
chip_gen: v6e
topology: v6e:2x2x1
jax: 0.10.0
libtpu: 0.0.40
codegen_flags: <defaults>
</compile_context>

<pallas_src>
import functools

import jax
import jax.numpy as jnp
from jax.experimental import pallas as pl
from jax.experimental.pallas import tpu as pltpu


def _ce_label_smooth_kernel(logits_ref, targets_ref, out_ref, acc_ref, *,
                            num_classes: int, epsilon: float,
                            batch: int, block_rows: int):
    i = pl.program_id(0)

    @pl.when(i == 0)
    def _init():
        acc_ref[0] = jnp.float32(0.0)

    # Load tile and compute in f32 regardless of input dtype (bf16-safe, v5e-safe).
    x = logits_ref[...].astype(jnp.float32)                       # (TN, C)

    # Row-validity mask for a possibly-ragged last block.
    row_ids = i * block_rows + jax.lax.broadcasted_iota(
        jnp.int32, (block_rows, 1), 0)                            # (TN, 1)
    valid = row_ids < batch                                       # (TN, 1) bool

    # Zero invalid rows so OOB/padded garbage stays finite.
    x = jnp.where(valid, x, 0.0)

    # Stable per-row logsumexp (exp pass is the only full-tile transcendental).
    m = jnp.max(x, axis=1, keepdims=True)                         # (TN, 1)
    sum_exp = jnp.sum(jnp.exp(x - m), axis=1, keepdims=True)      # (TN, 1)
    lse = jnp.log(sum_exp) + m                                    # (TN, 1)

    # Row sum of logits and logit gathered at the target class (iota compare).
    x_sum = jnp.sum(x, axis=1, keepdims=True)                     # (TN, 1)
    class_ids = jax.lax.broadcasted_iota(jnp.int32, x.shape, 1)   # (TN, C)
    x_t = jnp.sum(jnp.where(class_ids == targets_ref[...], x, 0.0),
                  axis=1, keepdims=True)                          # (TN, 1)

    # loss_row = lse - (1-eps)*x[t] - (eps/C)*sum_c x   (since sum_c t_c == 1)
    row_loss = lse - (1.0 - epsilon) * x_t - (epsilon / num_classes) * x_sum
    row_loss = jnp.where(valid, row_loss, 0.0)

    acc_ref[0] += jnp.sum(row_loss)

    @pl.when(i == pl.num_programs(0) - 1)
    def _finalize():
        out_ref[0, 0] = acc_ref[0] / batch


def cross_entropy_label_smooth(logits, targets, *, num_classes, epsilon,
                               block_rows: int = 512):
    """logits: (N, C) float (f32 or bf16); targets: (N,) int class indices.

    Returns the scalar f32 label-smoothed cross-entropy loss.
    """
    N, C = logits.shape
    assert C == num_classes
    targets2d = targets.reshape(N, 1).astype(jnp.int32)

    # Large row tiles amortize the ~0.35us per-grid-step overhead; if the whole
    # batch fits one tile just take it (block == full array dim is always legal
    # w.r.t. the (8,128) rule; otherwise block_rows=512 is a multiple of 8).
    tn = N if N <= block_rows else block_rows
    grid = (pl.cdiv(N, tn),)

    # TODO(synk): for very large vocabularies (C*TN*4B*2 > VMEM, esp. v7x 64MiB),
    # add a class-axis grid with an online logsumexp; not needed at these sizes.

    kernel = functools.partial(
        _ce_label_smooth_kernel,
        num_classes=num_classes,
        epsilon=float(epsilon),
        batch=N,
        block_rows=tn,
    )

    out = pl.pallas_call(
        kernel,
        out_shape=jax.ShapeDtypeStruct((1, 1), jnp.float32),
        grid_spec=pltpu.PrefetchScalarGridSpec(
            num_scalar_prefetch=0,
            grid=grid,
            in_specs=[
                pl.BlockSpec((tn, C), lambda i: (i, 0)),   # logits tile (TN, C)
                pl.BlockSpec((tn, 1), lambda i: (i, 0)),   # targets tile (TN, 1)
            ],
            out_specs=pl.BlockSpec((1, 1), lambda i: (0, 0),
                                   memory_space=pltpu.SMEM),
            scratch_shapes=[pltpu.SMEM((1,), jnp.float32)],  # running loss sum
        ),
        compiler_params=pltpu.CompilerParams(
            dimension_semantics=("arbitrary",)),             # accumulator axis
    )(logits, targets2d)
    return out[0, 0]


def _reference(logits, targets, *, num_classes, epsilon):
    logp = jax.nn.log_softmax(logits.astype(jnp.float32), axis=1)
    onehot = jax.nn.one_hot(targets, num_classes, dtype=jnp.float32)
    t = (1.0 - epsilon) * onehot + epsilon / num_classes
    return jnp.sum(jnp.mean(-t * logp, axis=0))


if __name__ == "__main__":
    num_classes = 32
    epsilon = 0.1

    key = jax.random.PRNGKey(0)
    k_logits, k_targets, k_logits2, k_targets2 = jax.random.split(key, 4)

    # Primary small case: (batch, num_classes) logits + (batch,) class indices.
    batch = 8
    logits = jax.random.normal(k_logits, (batch, num_classes), dtype=jnp.float32)
    targets = jax.random.randint(k_targets, (batch,), 0, num_classes,
                                 dtype=jnp.int32)

    loss = cross_entropy_label_smooth(
        logits, targets, num_classes=num_classes, epsilon=epsilon)
    loss = jax.block_until_ready(loss)
    ref = _reference(logits, targets, num_classes=num_classes, epsilon=epsilon)
    assert jnp.allclose(loss, ref, atol=1e-5, rtol=1e-5), (loss, ref)

    # Second case exercises the multi-block grid + ragged last block + masking
    # (batch=20 with 8-row tiles -> grid of 3, last block partially valid).
    batch2 = 20
    logits2 = jax.random.normal(k_logits2, (batch2, num_classes),
                                dtype=jnp.float32)
    targets2 = jax.random.randint(k_targets2, (batch2,), 0, num_classes,
                                  dtype=jnp.int32)
    loss2 = cross_entropy_label_smooth(
        logits2, targets2, num_classes=num_classes, epsilon=epsilon,
        block_rows=8)
    loss2 = jax.block_until_ready(loss2)
    ref2 = _reference(logits2, targets2, num_classes=num_classes,
                      epsilon=epsilon)
    assert jnp.allclose(loss2, ref2, atol=1e-5, rtol=1e-5), (loss2, ref2)

    print("KERNEL_OK")
</pallas_src>

<mosaic_0001>
module attributes {stable_mosaic.version = 11 : i64} {
  func.func @_ce_label_smooth_kernel(%arg0: i32, %arg1: memref<8x32xf32, #tpu.memory_space<vmem>>, %arg2: memref<8x1xi32, #tpu.memory_space<vmem>>, %arg3: memref<1x1xf32, #tpu.memory_space<smem>>, %arg4: memref<1xf32, #tpu.memory_space<smem>>) attributes {dimension_semantics = [#tpu.dimension_semantics<arbitrary>], iteration_bounds = array<i64: 1>, scalar_prefetch = 0 : i64, scratch_operands = 1 : i64, tpu.core_type = #tpu.core_type<tc>, window_params = [{transform_indices = @transform_0, window_bounds = array<i64: 8, 32>}, {transform_indices = @transform_1, window_bounds = array<i64: 8, 1>}, {transform_indices = @transform_2, window_bounds = array<i64: 1, 1>}]} {
    %c0_i32 = arith.constant 0 : i32
    %0 = arith.cmpi eq, %arg0, %c0_i32 : i32
    %1 = arith.extui %0 : i1 to i32
    %c0_i32_0 = arith.constant 0 : i32
    %2 = arith.cmpi ne, %1, %c0_i32_0 : i32
    scf.if %2 {
      %cst_18 = arith.constant 0.000000e+00 : f32
      %c0_19 = arith.constant 0 : index
      %51 = memref.load %arg4[%c0_19] : memref<1xf32, #tpu.memory_space<smem>>
      memref.store %cst_18, %arg4[%c0_19] : memref<1xf32, #tpu.memory_space<smem>>
    } else {
    }
    %c0 = arith.constant 0 : index
    %c0_1 = arith.constant 0 : index
    %3 = vector.load %arg1[%c0, %c0_1] : memref<8x32xf32, #tpu.memory_space<vmem>>, vector<8x32xf32>
    %c8_i32 = arith.constant 8 : i32
    %4 = arith.muli %arg0, %c8_i32 : i32
    %5 = tpu.iota {dimensions = array<i32: 0>} : vector<8x1xi32>
    %6 = vector.broadcast %4 : i32 to vector<8x1xi32>
    %7 = arith.addi %6, %5 : vector<8x1xi32>
    %c8_i32_2 = arith.constant 8 : i32
    %8 = vector.broadcast %c8_i32_2 : i32 to vector<8x1xi32>
    %9 = arith.cmpi slt, %7, %8 : vector<8x1xi32>
    %cst = arith.constant 0.000000e+00 : f32
    %10 = vector.shape_cast %9 : vector<8x1xi1> to vector<8x1xi1>
    %11 = vector.broadcast %10 : vector<8x1xi1> to vector<8x32xi1>
    %12 = vector.broadcast %cst : f32 to vector<8x32xf32>
    %13 = arith.select %11, %3, %12 : vector<8x32xi1>, vector<8x32xf32>
    %cst_3 = arith.constant dense<0xFF800000> : vector<8xf32>
    %14 = vector.multi_reduction <maximumf>, %13, %cst_3 [1] : vector<8x32xf32> to vector<8xf32>
    %15 = vector.shape_cast %14 : vector<8xf32> to vector<8x1xf32>
    %16 = vector.broadcast %15 : vector<8x1xf32> to vector<8x32xf32>
    %17 = arith.subf %13, %16 : vector<8x32xf32>
    %18 = math.exp %17 : vector<8x32xf32>
    %cst_4 = arith.constant dense<0.000000e+00> : vector<8xf32>
    %19 = vector.multi_reduction <add>, %18, %cst_4 [1] : vector<8x32xf32> to vector<8xf32>
    %20 = vector.shape_cast %19 : vector<8xf32> to vector<8x1xf32>
    %21 = math.log %20 : vector<8x1xf32>
    %22 = arith.addf %21, %15 : vector<8x1xf32>
    %cst_5 = arith.constant dense<0.000000e+00> : vector<8xf32>
    %23 = vector.multi_reduction <add>, %13, %cst_5 [1] : vector<8x32xf32> to vector<8xf32>
    %24 = vector.shape_cast %23 : vector<8xf32> to vector<8x1xf32>
    %25 = tpu.iota {dimensions = array<i32: 1>} : vector<8x32xi32>
    %c0_6 = arith.constant 0 : index
    %c0_7 = arith.constant 0 : index
    %26 = vector.load %arg2[%c0_6, %c0_7] : memref<8x1xi32, #tpu.memory_space<vmem>>, vector<8x1xi32>
    %27 = vector.broadcast %26 : vector<8x1xi32> to vector<8x32xi32>
    %28 = arith.cmpi eq, %25, %27 : vector<8x32xi32>
    %cst_8 = arith.constant 0.000000e+00 : f32
    %29 = vector.broadcast %cst_8 : f32 to vector<8x32xf32>
    %30 = arith.select %28, %13, %29 : vector<8x32xi1>, vector<8x32xf32>
    %cst_9 = arith.constant dense<0.000000e+00> : vector<8xf32>
    %31 = vector.multi_reduction <add>, %30, %cst_9 [1] : vector<8x32xf32> to vector<8xf32>
    %32 = vector.shape_cast %31 : vector<8xf32> to vector<8x1xf32>
    %cst_10 = arith.constant 0.899999976 : f32
    %33 = vector.broadcast %cst_10 : f32 to vector<8x1xf32>
    %34 = arith.mulf %33, %32 : vector<8x1xf32>
    %35 = arith.subf %22, %34 : vector<8x1xf32>
    %cst_11 = arith.constant 3.125000e-03 : f32
    %36 = vector.broadcast %cst_11 : f32 to vector<8x1xf32>
    %37 = arith.mulf %36, %24 : vector<8x1xf32>
    %38 = arith.subf %35, %37 : vector<8x1xf32>
    %cst_12 = arith.constant 0.000000e+00 : f32
    %39 = vector.broadcast %cst_12 : f32 to vector<8x1xf32>
    %40 = arith.select %9, %38, %39 : vector<8x1xi1>, vector<8x1xf32>
    %c0_13 = arith.constant 0 : index
    %41 = memref.load %arg4[%c0_13] : memref<1xf32, #tpu.memory_space<smem>>
    %42 = vector.shape_cast %40 : vector<8x1xf32> to vector<1x8x1xf32>
    %cst_14 = arith.constant dense<0.000000e+00> : vector<1xf32>
    %43 = vector.multi_reduction <add>, %42, %cst_14 [1, 2] : vector<1x8x1xf32> to vector<1xf32>
    %44 = vector.shape_cast %43 : vector<1xf32> to vector<1x1x1xf32>
    %45 = vector.extract %44[0, 0, 0] : f32 from vector<1x1x1xf32>
    %46 = arith.addf %41, %45 : f32
    %c0_15 = arith.constant 0 : index
    %47 = memref.load %arg4[%c0_15] : memref<1xf32, #tpu.memory_space<smem>>
    memref.store %46, %arg4[%c0_15] : memref<1xf32, #tpu.memory_space<smem>>
    %c0_i32_16 = arith.constant 0 : i32
    %48 = arith.cmpi eq, %arg0, %c0_i32_16 : i32
    %49 = arith.extui %48 : i1 to i32
    %c0_i32_17 = arith.constant 0 : i32
    %50 = arith.cmpi ne, %49, %c0_i32_17 : i32
    scf.if %50 {
      %c0_18 = arith.constant 0 : index
      %51 = memref.load %arg4[%c0_18] : memref<1xf32, #tpu.memory_space<smem>>
      %cst_19 = arith.constant 8.000000e+00 : f32
      %52 = arith.divf %51, %cst_19 : f32
      %c0_20 = arith.constant 0 : index
      %c0_21 = arith.constant 0 : index
      %53 = memref.load %arg3[%c0_20, %c0_21] : memref<1x1xf32, #tpu.memory_space<smem>>
      memref.store %52, %arg3[%c0_20, %c0_21] : memref<1x1xf32, #tpu.memory_space<smem>>
    } else {
    }
    return
  }
  func.func @transform_0(%arg0: i32) -> (i32, i32) {
    %c0_i32 = arith.constant 0 : i32
    %c0_i32_0 = arith.constant 0 : i32
    return %arg0, %c0_i32 : i32, i32
  }
  func.func @transform_1(%arg0: i32) -> (i32, i32) {
    %c0_i32 = arith.constant 0 : i32
    %c0_i32_0 = arith.constant 0 : i32
    return %arg0, %c0_i32 : i32, i32
  }
  func.func @transform_2(%arg0: i32) -> (i32, i32) {
    %c0_i32 = arith.constant 0 : i32
    %c0_i32_0 = arith.constant 0 : i32
    %c0_i32_1 = arith.constant 0 : i32
    return %c0_i32, %c0_i32_0 : i32, i32
  }
}

</mosaic_0001>

<llo_original>
// kernel: tpu_custom_call.1
$region0: #{tpu_custom_call.1}
  #allocation0 [shape = 'u32[]', space=smem, size = 0x4, offset = 0x4, fixed_abs, tag = 'smem constant byte address 0x4 - core index']
  #allocation1 [shape = 'u32[144,128]{1,0:T(1,128)}', space=vmem, size = 0x12000, scoped, tag = 'internal scratch']
  #allocation2 [shape = 'f32[1]{0:T(128)}', space=smem, size = 0x200, scoped, tag = 'scratch operand']
  %s0 = inlined_call_operand.vmem [shape: f32[8,32], index: 0, kind: input, shape index: {}]
  %s1 = inlined_call_operand.vmem [shape: s32[8,1], index: 1, kind: input, shape index: {}]
  %s2 = inlined_call_operand.hbm [shape: f32[1,1], index: 2, kind: output, shape index: {}]
  %s3 = sld [smem:[#allocation0]]
  $region26: #{tpu_custom_call.1} parent=0
    _
  %s5 = ssub.s32 1, %s3
  %s6 = scalar_select 0, %s5, %s3
  $region1: #{tpu_custom_call.1} parent=0
    #allocation3 [shape = 'u8[512]{0}', space=smem, size = 0x200, scoped, tag = 'output window, operand 0, single buffered']
    #allocation4 [shape = 's32[1]{0}', space=sflag, size = 0x4, scoped, tag = 'scoped memory for tpu_custom_call.1']
    %7 = vsyncpa [#allocation4], 0
    // Predicated region
    $region2: #{tpu_custom_call.1} parent=1 // pred_check
      _
    $region3: #{tpu_custom_call.1} parent=1 // pred_check_branch
      %9 = sbr.rel (0) target = $region5
    $region4: #{tpu_custom_call.1} parent=1 // pred_region
      _
    $region5: #{tpu_custom_call.1} parent=1 // pred_fallthru
      _
    // Predicated region
    $region6: #{tpu_custom_call.1} parent=1 // pred_check
      _
    $region7: #{tpu_custom_call.1} parent=1 // pred_check_branch
      %11 = sbr.rel (0) target = $region9
    $region8: #{tpu_custom_call.1} parent=1 // pred_region
      _
    $region9: #{tpu_custom_call.1} parent=1 // pred_fallthru
      _
    %p12 = scmp.eq.s32.totalorder 0, 0
    // Predicated region
    $region10: #{tpu_custom_call.1} parent=1 // pred_check
      %p13 = pneg %p12
    $region11: #{tpu_custom_call.1} parent=1 // pred_check_branch
      %15 = sbr.rel (%p13) target = $region13
    $region12: #{tpu_custom_call.1} parent=1 // pred_region
      %s16 = scalar_lea.smem [#allocation2], 0
      %17 = sst [smem:[%s16]] 0.0
    $region13: #{tpu_custom_call.1} parent=1 // pred_fallthru
      _
    %v18 = vld [vmem:[%s0] sm:$0xff]
    %s19 = smul.u32 0, 8
    %v20 = vlaneseq
    %v21 = vshrl.u32 %v20, 7
    %v22 = vstv %s19
    %v23 = vadd.s32 %v22, %v21
    %vm24 = vcmp.lt.s32.totalorder %v23, 8
    %v25 = vsel %vm24, 1, 0
    %vm26 = vcmp.eq.s32.totalorder %v25, 1
    %v27 = vsel %vm26, %v18, 0.0
    %vm28 = vcmask 261120
    %v29 = vsel %vm28, %v27, -inf
    %30 = vmax.xlane.f32.xlu0 %v29
    %v31 = vpop.xlane.xlu0 %30
    %v32 = vsub.f32 %v27, %v31
    %v33 = vmul.f32 %v32, 1.442695
    %v34 = vpow.pop %v33
    %v35 = vsel %vm28, %v34, 0.0
    %36 = vadd.xlane.f32.xlu0 %v35
    %v37 = vpop.xlane.xlu0 %36
    %v38 = vlog2.pop %v37
    %v39 = vmul.f32 %v38, 0.6931472
    %v40 = vadd.f32 %v39, %v31
    %v41 = vsel %vm28, %v27, 0.0
    %42 = vadd.xlane.f32.xlu0 %v41
    %v43 = vpop.xlane.xlu0 %42
    %v44 = vlaneseq
    %v45 = vand.u32 %v44, 127
    %v46 = vld [vmem:[%s1] sm:$0xff]
    %47 = vset.pattern.permute.xlu0 0
    %48 = vperm.xlu0 %47, %v46
    %v49 = vpop.permute.xlu0 %48
    %vm50 = vcmp.eq.s32.totalorder %v45, %v49
    %v51 = vsel %vm50, %v27, 0.0
    %v52 = vsel %vm28, %v51, 0.0
    %53 = vadd.xlane.f32.xlu0 %v52
    %v54 = vpop.xlane.xlu0 %53
    %v55 = vmul.f32 %v54, 0.9
    %v56 = vsub.f32 %v40, %v55
    %v57 = vmul.f32 %v43, 0.003125
    %v58 = vsub.f32 %v56, %v57
    %v59 = vsel %vm24, %v58, 0.0
    %s60 = sld [smem:[#allocation2]]
    %vm61 = vcmask 7168
    %v62 = vsel %vm61, %v59, 0.0
    %63 = vadd.xlane.f32.xlu0 %v62
    %v64 = vpop.xlane.xlu0 %63
    %v65 = vrot.slane %v64, 4
    %v66 = vadd.f32 %v64, %v65
    %v67 = vrot.slane %v66, 2
    %v68 = vadd.f32 %v66, %v67
    %v69 = vrot.slane %v68, 1
    %v70 = vadd.f32 %v68, %v69
    %s71 = vtos %v70
    %s72 = sadd.f32 %s60, %s71
    %s73 = scalar_lea.smem [#allocation2], 0
    %74 = sst [smem:[%s73]] %s72
    // Predicated region
    $region14: #{tpu_custom_call.1} parent=1 // pred_check
      %p75 = pneg %p12
    $region15: #{tpu_custom_call.1} parent=1 // pred_check_branch
      %77 = sbr.rel (%p75) target = $region17
    $region16: #{tpu_custom_call.1} parent=1 // pred_region
      %s78 = sld [smem:[#allocation2]]
      %v79 = vrcp.pop 8.0
      %s80 = vtos %v79
      %s81 = smul.f32 %s78, %s80
      %s82 = scalar_lea.smem [#allocation3], 0
      %83 = sst [smem:[%s82]] %s81
    $region17: #{tpu_custom_call.1} parent=1 // pred_fallthru
      _
    // Predicated region
    $region18: #{tpu_custom_call.1} parent=1 // pred_check
      _
    $region19: #{tpu_custom_call.1} parent=1 // pred_check_branch
      %85 = sbr.rel (0) target = $region21
    $region20: #{tpu_custom_call.1} parent=1 // pred_region
      %s87 = ssub.s32 16, 16
      %88 = vsyncadd [#allocation4], %s87
      %91 = dma.smem_to_hbm [#allocation3], 16, %s2, [#allocation4]
    $region21: #{tpu_custom_call.1} parent=1 // pred_fallthru
      _
    // Predicated region
    $region22: #{tpu_custom_call.1} parent=1 // pred_check
      _
    $region23: #{tpu_custom_call.1} parent=1 // pred_check_branch
      %93 = sbr.rel (0) target = $region25
    $region24: #{tpu_custom_call.1} parent=1 // pred_region
      %94 = dma.done [#allocation4], 16
    $region25: #{tpu_custom_call.1} parent=1 // pred_fallthru
      _
    %95 = sfence
    %96 = vsyncpa [#allocation4], 1

</llo_original>
